<compile_context>
chip_gen: v7x
topology: tpu7x:2x2x1
jax: 0.10.0
libtpu: 0.0.40
codegen_flags: <defaults>
</compile_context>

<pallas_src>
import functools

import jax
import jax.numpy as jnp
from jax.experimental import pallas as pl
from jax.experimental.pallas import tpu as pltpu


def _round_up(n, m):
    return ((n + m - 1) // m) * m


def _pad_axis(a, axis, new_size):
    pad = new_size - a.shape[axis]
    if pad == 0:
        return a
    widths = [(0, 0)] * a.ndim
    widths[axis] = (0, pad)
    return jnp.pad(a, widths)


def _mlp_kernel(num_classes, use_eup_recip, training,
                x_ref, w1_ref, b1_ref, w2_ref, b2_ref, w3_ref, b3_ref, *rest):
    if training:
        mask_ref, o_ref = rest
    else:
        (o_ref,) = rest

    cdt = w1_ref.dtype  # compute (MXU) dtype, e.g. bf16

    # ---- lin1 + ReLU (MXU matmul, f32 accumulation) -------------------------
    h = jnp.dot(x_ref[...], w1_ref[...],
                preferred_element_type=jnp.float32) + b1_ref[...]
    h = jnp.maximum(h, 0.0)

    # ---- lin2 + ReLU ---------------------------------------------------------
    h = jnp.dot(h.astype(cdt), w2_ref[...],
                preferred_element_type=jnp.float32) + b2_ref[...]
    h = jnp.maximum(h, 0.0)

    # ---- dropout(p) ----------------------------------------------------------
    # mask_ref holds 0.0 or 1/(1-p) (pre-scaled) -> one VPU multiply, f32.
    if training:
        h = h * mask_ref[...]

    # ---- lin (classifier) ----------------------------------------------------
    logits = jnp.dot(h.astype(cdt), w3_ref[...],
                     preferred_element_type=jnp.float32) + b3_ref[...]

    # Padded class lanes (lane-density padding to 128) must not leak into the
    # softmax denominator.
    c_pad = logits.shape[-1]
    if num_classes != c_pad:
        col = jax.lax.broadcasted_iota(jnp.int32, logits.shape, 1)
        logits = jnp.where(col < num_classes, logits, -1e30)

    # ---- softmax over dim=1 (f32) --------------------------------------------
    m = jnp.max(logits, axis=-1, keepdims=True)
    e = jnp.exp(logits - m)
    denom = jnp.sum(e, axis=-1, keepdims=True)
    if use_eup_recip:
        probs = e * pl.reciprocal(denom, approx=True)   # EUP slot, frees VALU
    else:
        probs = e / denom                               # CPU-interpret fallback
    o_ref[...] = probs.astype(o_ref.dtype)


def _resident_spec(shape, on_tpu):
    """Grid-invariant (weight/bias) BlockSpec; single-buffered on TPU."""
    index_map = lambda i: (0,) * len(shape)
    if on_tpu and hasattr(pl, "Buffered"):
        try:
            return pl.BlockSpec(shape, index_map, pipeline_mode=pl.Buffered(1))
        except TypeError:
            pass
    return pl.BlockSpec(shape, index_map)


def mlp_forward(x, params, *, training=False, dropout_p=0.5, dropout_key=None,
                tm=256, compute_dtype=jnp.bfloat16,
                vmem_limit_bytes=64 * 1024 * 1024):
    """Fused MLP forward. x: (N, num_features). Returns (N, num_classes) f32."""
    w1, b1, w2, b2, w3, b3 = params
    N, F = x.shape
    H = w1.shape[1]
    C = w3.shape[1]

    LANE, SUB = 128, 8
    H_pad = _round_up(H, LANE)
    C_pad = _round_up(C, LANE)

    # Row tile: multiple of 8 sublanes, capped by tm; ragged batches padded.
    tm = max(SUB, _round_up(min(tm, _round_up(N, SUB)), SUB))
    N_pad = _round_up(N, tm)

    x_p = _pad_axis(x, 0, N_pad).astype(compute_dtype)
    w1_p = _pad_axis(w1, 1, H_pad).astype(compute_dtype)
    b1_p = _pad_axis(b1.reshape(1, -1), 1, H_pad).astype(jnp.float32)
    w2_p = _pad_axis(_pad_axis(w2, 0, H_pad), 1, H_pad).astype(compute_dtype)
    b2_p = _pad_axis(b2.reshape(1, -1), 1, H_pad).astype(jnp.float32)
    w3_p = _pad_axis(_pad_axis(w3, 0, H_pad), 1, C_pad).astype(compute_dtype)
    b3_p = _pad_axis(b3.reshape(1, -1), 1, C_pad).astype(jnp.float32)

    on_tpu = jax.default_backend() == "tpu"

    inputs = [x_p, w1_p, b1_p, w2_p, b2_p, w3_p, b3_p]
    in_specs = [
        pl.BlockSpec((tm, F), lambda i: (i, 0)),        # x row tile
        _resident_spec((F, H_pad), on_tpu),             # W1 (resident)
        _resident_spec((1, H_pad), on_tpu),             # b1
        _resident_spec((H_pad, H_pad), on_tpu),         # W2
        _resident_spec((1, H_pad), on_tpu),             # b2
        _resident_spec((H_pad, C_pad), on_tpu),         # W3
        _resident_spec((1, C_pad), on_tpu),             # b3
    ]

    if training:
        if dropout_key is None:
            dropout_key = jax.random.PRNGKey(0)
        keep = jax.random.bernoulli(dropout_key, 1.0 - dropout_p, (N_pad, H_pad))
        mask = keep.astype(jnp.float32) * (1.0 / (1.0 - dropout_p))
        inputs.append(mask)
        in_specs.append(pl.BlockSpec((tm, H_pad), lambda i: (i, 0)))

    itemsize = jnp.dtype(compute_dtype).itemsize
    bytes_accessed = (
        N_pad * F * itemsize
        + (F * H_pad + H_pad * H_pad + H_pad * C_pad) * itemsize
        + (2 * H_pad + C_pad) * 4
        + N_pad * C_pad * 4
        + (N_pad * H_pad * 4 if training else 0)
    )
    cost = pl.CostEstimate(
        flops=2 * N_pad * (F * H_pad + H_pad * H_pad + H_pad * C_pad),
        transcendentals=N_pad * C_pad,
        bytes_accessed=bytes_accessed,
    )

    kernel = functools.partial(_mlp_kernel, C, on_tpu, training)

    out = pl.pallas_call(
        kernel,
        out_shape=jax.ShapeDtypeStruct((N_pad, C_pad), jnp.float32),
        grid=(N_pad // tm,),
        in_specs=in_specs,
        out_specs=pl.BlockSpec((tm, C_pad), lambda i: (i, 0)),
        compiler_params=pltpu.CompilerParams(
            dimension_semantics=("parallel",),   # rows independent -> 2 TCs on v7x
            vmem_limit_bytes=vmem_limit_bytes),
        cost_estimate=cost,
    )(*inputs)

    return out[:N, :C]


def init_params(key, num_features, hidden_channels, num_classes):
    """Deterministic init mimicking PyTorch Linear default U(-1/sqrt(fan_in), ...)."""
    def linear(k, fan_in, fan_out):
        kw, kb = jax.random.split(k)
        bound = 1.0 / jnp.sqrt(fan_in)
        w = jax.random.uniform(kw, (fan_in, fan_out), jnp.float32, -bound, bound)
        b = jax.random.uniform(kb, (1, fan_out), jnp.float32, -bound, bound)
        return w, b

    k1, k2, k3 = jax.random.split(key, 3)
    w1, b1 = linear(k1, num_features, hidden_channels)
    w2, b2 = linear(k2, hidden_channels, hidden_channels)
    w3, b3 = linear(k3, hidden_channels, num_classes)
    return (w1, b1, w2, b2, w3, b3)


def mlp_reference(x, params):
    """Pure-JAX f32 reference of the eval-mode forward pass."""
    w1, b1, w2, b2, w3, b3 = params
    h = jnp.maximum(x @ w1 + b1, 0.0)
    h = jnp.maximum(h @ w2 + b2, 0.0)
    logits = h @ w3 + b3
    return jax.nn.softmax(logits, axis=1)


if __name__ == "__main__":
    num_features, hidden_channels, num_classes = 16, 32, 8
    N = 16  # batch of feature rows

    key = jax.random.PRNGKey(0)
    kx, kp, kd = jax.random.split(key, 3)
    x = jax.random.normal(kx, (N, num_features), jnp.float32)
    params = init_params(kp, num_features, hidden_channels, num_classes)

    ref = mlp_reference(x, params)

    # Eval mode, f32 compute: tight check against the pure-JAX reference.
    out_f32 = jax.block_until_ready(
        mlp_forward(x, params, training=False, compute_dtype=jnp.float32))
    assert out_f32.shape == (N, num_classes)
    assert jnp.allclose(out_f32, ref, atol=5e-3, rtol=5e-3)
    assert jnp.allclose(jnp.sum(out_f32, axis=1), 1.0, atol=1e-2)

    # Eval mode, default bf16 MXU path (looser tolerance for bf16 matmuls).
    out_bf16 = jax.block_until_ready(mlp_forward(x, params, training=False))
    assert out_bf16.shape == (N, num_classes)
    assert jnp.allclose(out_bf16, ref, atol=5e-2, rtol=5e-2)
    assert jnp.allclose(jnp.sum(out_bf16, axis=1), 1.0, atol=1e-2)

    # Training mode: Bernoulli keep-mask generated host-side, applied in-kernel.
    out_tr = jax.block_until_ready(
        mlp_forward(x, params, training=True, dropout_key=kd))
    assert out_tr.shape == (N, num_classes)
    assert jnp.allclose(jnp.sum(out_tr, axis=1), 1.0, atol=1e-2)
    assert not bool(jnp.any(jnp.isnan(out_tr)))

    print("KERNEL_OK")
</pallas_src>

<mosaic_0001>
module attributes {stable_mosaic.version = 11 : i64} {
  func.func @_mlp_kernel(%arg0: i32, %arg1: memref<16x16xf32, #tpu.memory_space<vmem>>, %arg2: memref<16x128xf32, #tpu.memory_space<vmem>>, %arg3: memref<1x128xf32, #tpu.memory_space<vmem>>, %arg4: memref<128x128xf32, #tpu.memory_space<vmem>>, %arg5: memref<1x128xf32, #tpu.memory_space<vmem>>, %arg6: memref<128x128xf32, #tpu.memory_space<vmem>>, %arg7: memref<1x128xf32, #tpu.memory_space<vmem>>, %arg8: memref<16x128xf32, #tpu.memory_space<vmem>>) attributes {dimension_semantics = [#tpu.dimension_semantics<parallel>], iteration_bounds = array<i64: 1>, scalar_prefetch = 0 : i64, scratch_operands = 0 : i64, tpu.core_type = #tpu.core_type<tc>, window_params = [{transform_indices = @transform_0, window_bounds = array<i64: 16, 16>}, {pipeline_mode = #tpu.pipeline_mode<synchronous>, transform_indices = @transform_1, window_bounds = array<i64: 16, 128>}, {pipeline_mode = #tpu.pipeline_mode<synchronous>, transform_indices = @transform_2, window_bounds = array<i64: 1, 128>}, {pipeline_mode = #tpu.pipeline_mode<synchronous>, transform_indices = @transform_3, window_bounds = array<i64: 128, 128>}, {pipeline_mode = #tpu.pipeline_mode<synchronous>, transform_indices = @transform_4, window_bounds = array<i64: 1, 128>}, {pipeline_mode = #tpu.pipeline_mode<synchronous>, transform_indices = @transform_5, window_bounds = array<i64: 128, 128>}, {pipeline_mode = #tpu.pipeline_mode<synchronous>, transform_indices = @transform_6, window_bounds = array<i64: 1, 128>}, {transform_indices = @transform_7, window_bounds = array<i64: 16, 128>}]} {
    %c0 = arith.constant 0 : index
    %c0_0 = arith.constant 0 : index
    %0 = vector.load %arg1[%c0, %c0_0] : memref<16x16xf32, #tpu.memory_space<vmem>>, vector<16x16xf32>
    %c0_1 = arith.constant 0 : index
    %c0_2 = arith.constant 0 : index
    %1 = vector.load %arg2[%c0_1, %c0_2] : memref<16x128xf32, #tpu.memory_space<vmem>>, vector<16x128xf32>
    %cst = arith.constant dense<0.000000e+00> : vector<16x128xf32>
    %2 = tpu.matmul %0, %1, %cst {dimension_numbers = #tpu.dot_dimension_numbers<[1], [0], [0], [1], [0, 0, 1, 1], [], []>} : vector<16x16xf32>, vector<16x128xf32>, vector<16x128xf32> -> vector<16x128xf32>
    %c0_3 = arith.constant 0 : index
    %c0_4 = arith.constant 0 : index
    %3 = vector.load %arg3[%c0_3, %c0_4] : memref<1x128xf32, #tpu.memory_space<vmem>>, vector<1x128xf32>
    %4 = vector.broadcast %3 : vector<1x128xf32> to vector<16x128xf32>
    %5 = arith.addf %2, %4 : vector<16x128xf32>
    %cst_5 = arith.constant 0.000000e+00 : f32
    %6 = vector.broadcast %cst_5 : f32 to vector<16x128xf32>
    %7 = arith.maximumf %5, %6 : vector<16x128xf32>
    %c0_6 = arith.constant 0 : index
    %c0_7 = arith.constant 0 : index
    %8 = vector.load %arg4[%c0_6, %c0_7] : memref<128x128xf32, #tpu.memory_space<vmem>>, vector<128x128xf32>
    %cst_8 = arith.constant dense<0.000000e+00> : vector<16x128xf32>
    %9 = tpu.matmul %7, %8, %cst_8 {dimension_numbers = #tpu.dot_dimension_numbers<[1], [0], [0], [1], [0, 0, 1, 1], [], []>} : vector<16x128xf32>, vector<128x128xf32>, vector<16x128xf32> -> vector<16x128xf32>
    %c0_9 = arith.constant 0 : index
    %c0_10 = arith.constant 0 : index
    %10 = vector.load %arg5[%c0_9, %c0_10] : memref<1x128xf32, #tpu.memory_space<vmem>>, vector<1x128xf32>
    %11 = vector.broadcast %10 : vector<1x128xf32> to vector<16x128xf32>
    %12 = arith.addf %9, %11 : vector<16x128xf32>
    %cst_11 = arith.constant 0.000000e+00 : f32
    %13 = vector.broadcast %cst_11 : f32 to vector<16x128xf32>
    %14 = arith.maximumf %12, %13 : vector<16x128xf32>
    %c0_12 = arith.constant 0 : index
    %c0_13 = arith.constant 0 : index
    %15 = vector.load %arg6[%c0_12, %c0_13] : memref<128x128xf32, #tpu.memory_space<vmem>>, vector<128x128xf32>
    %cst_14 = arith.constant dense<0.000000e+00> : vector<16x128xf32>
    %16 = tpu.matmul %14, %15, %cst_14 {dimension_numbers = #tpu.dot_dimension_numbers<[1], [0], [0], [1], [0, 0, 1, 1], [], []>} : vector<16x128xf32>, vector<128x128xf32>, vector<16x128xf32> -> vector<16x128xf32>
    %c0_15 = arith.constant 0 : index
    %c0_16 = arith.constant 0 : index
    %17 = vector.load %arg7[%c0_15, %c0_16] : memref<1x128xf32, #tpu.memory_space<vmem>>, vector<1x128xf32>
    %18 = vector.broadcast %17 : vector<1x128xf32> to vector<16x128xf32>
    %19 = arith.addf %16, %18 : vector<16x128xf32>
    %20 = tpu.iota {dimensions = array<i32: 1>} : vector<16x128xi32>
    %c8_i32 = arith.constant 8 : i32
    %21 = vector.broadcast %c8_i32 : i32 to vector<16x128xi32>
    %22 = arith.cmpi slt, %20, %21 : vector<16x128xi32>
    %cst_17 = arith.constant -1.000000e+30 : f32
    %23 = vector.broadcast %cst_17 : f32 to vector<16x128xf32>
    %24 = arith.select %22, %19, %23 : vector<16x128xi1>, vector<16x128xf32>
    %cst_18 = arith.constant dense<0xFF800000> : vector<16xf32>
    %25 = vector.multi_reduction <maximumf>, %24, %cst_18 [1] : vector<16x128xf32> to vector<16xf32>
    %26 = vector.shape_cast %25 : vector<16xf32> to vector<16x1xf32>
    %27 = vector.broadcast %26 : vector<16x1xf32> to vector<16x128xf32>
    %28 = arith.subf %24, %27 : vector<16x128xf32>
    %29 = math.exp %28 : vector<16x128xf32>
    %cst_19 = arith.constant dense<0.000000e+00> : vector<16xf32>
    %30 = vector.multi_reduction <add>, %29, %cst_19 [1] : vector<16x128xf32> to vector<16xf32>
    %31 = vector.shape_cast %30 : vector<16xf32> to vector<16x1xf32>
    %32 = vector.broadcast %31 : vector<16x1xf32> to vector<16x128xf32>
    %33 = arith.divf %29, %32 : vector<16x128xf32>
    %c0_20 = arith.constant 0 : index
    %c0_21 = arith.constant 0 : index
    %34 = vector.load %arg8[%c0_20, %c0_21] : memref<16x128xf32, #tpu.memory_space<vmem>>, vector<16x128xf32>
    tpu.vector_store %arg8[%c0_20, %c0_21], %33 {strides = array<i32>} : memref<16x128xf32, #tpu.memory_space<vmem>>, vector<16x128xf32>,
    return
  }
  func.func @transform_0(%arg0: i32) -> (i32, i32) {
    %c0_i32 = arith.constant 0 : i32
    %c0_i32_0 = arith.constant 0 : i32
    return %arg0, %c0_i32 : i32, i32
  }
  func.func @transform_1(%arg0: i32) -> (i32, i32) {
    %c0_i32 = arith.constant 0 : i32
    %c0_i32_0 = arith.constant 0 : i32
    %c0_i32_1 = arith.constant 0 : i32
    return %c0_i32, %c0_i32_0 : i32, i32
  }
  func.func @transform_2(%arg0: i32) -> (i32, i32) {
    %c0_i32 = arith.constant 0 : i32
    %c0_i32_0 = arith.constant 0 : i32
    %c0_i32_1 = arith.constant 0 : i32
    return %c0_i32, %c0_i32_0 : i32, i32
  }
  func.func @transform_3(%arg0: i32) -> (i32, i32) {
    %c0_i32 = arith.constant 0 : i32
    %c0_i32_0 = arith.constant 0 : i32
    %c0_i32_1 = arith.constant 0 : i32
    return %c0_i32, %c0_i32_0 : i32, i32
  }
  func.func @transform_4(%arg0: i32) -> (i32, i32) {
    %c0_i32 = arith.constant 0 : i32
    %c0_i32_0 = arith.constant 0 : i32
    %c0_i32_1 = arith.constant 0 : i32
    return %c0_i32, %c0_i32_0 : i32, i32
  }
  func.func @transform_5(%arg0: i32) -> (i32, i32) {
    %c0_i32 = arith.constant 0 : i32
    %c0_i32_0 = arith.constant 0 : i32
    %c0_i32_1 = arith.constant 0 : i32
    return %c0_i32, %c0_i32_0 : i32, i32
  }
  func.func @transform_6(%arg0: i32) -> (i32, i32) {
    %c0_i32 = arith.constant 0 : i32
    %c0_i32_0 = arith.constant 0 : i32
    %c0_i32_1 = arith.constant 0 : i32
    return %c0_i32, %c0_i32_0 : i32, i32
  }
  func.func @transform_7(%arg0: i32) -> (i32, i32) {
    %c0_i32 = arith.constant 0 : i32
    %c0_i32_0 = arith.constant 0 : i32
    return %arg0, %c0_i32 : i32, i32
  }
}

</mosaic_0001>

<llo_original>
// kernel: tpu_custom_call.1
$region0: #{tpu_custom_call.1}
  #allocation0 [shape = 'u32[]', space=smem, size = 0x4, offset = 0x4, fixed_abs, tag = 'smem constant byte address 0x4 - core index']
  #allocation1 [shape = 'u32[144,128]{1,0:T(1,128)}', space=vmem, size = 0x12000, scoped, tag = 'internal scratch']
  %s0 = inlined_call_operand.hbm [shape: f32[16,16], index: 0, kind: input, shape index: {}]
  %s1 = inlined_call_operand.hbm [shape: f32[16,128], index: 1, kind: input, shape index: {}]
  %s2 = inlined_call_operand.hbm [shape: f32[1,128], index: 2, kind: input, shape index: {}]
  %s3 = inlined_call_operand.hbm [shape: f32[128,128], index: 3, kind: input, shape index: {}]
  %s4 = inlined_call_operand.hbm [shape: f32[1,128], index: 4, kind: input, shape index: {}]
  %s5 = inlined_call_operand.hbm [shape: f32[128,128], index: 5, kind: input, shape index: {}]
  %s6 = inlined_call_operand.hbm [shape: f32[1,128], index: 6, kind: input, shape index: {}]
  %s7 = inlined_call_operand.hbm [shape: f32[16,128], index: 7, kind: output, shape index: {}]
  %s8 = sld [smem:[#allocation0]]
  $region66: #{tpu_custom_call.1} parent=0
    _
  %s10 = ssub.s32 1, %s8
  %s11 = scalar_select 0, %s10, %s8
  $region1: #{tpu_custom_call.1} parent=0
    #allocation2 [shape = 'u8[8192]{0}', space=vmem, size = 0x2000, scoped, tag = 'input window, operand 0, single buffered']
    #allocation3 [shape = 's32[1]{0}', space=sflag, size = 0x4, scoped, tag = 'scoped memory for tpu_custom_call.1']
    #allocation4 [shape = 's32[1]{0}', space=sflag, size = 0x4, scoped, tag = 'scoped memory for tpu_custom_call.1']
    #allocation5 [shape = 'u8[8192]{0}', space=vmem, size = 0x2000, scoped, tag = 'input window, operand 1, single buffered']
    #allocation6 [shape = 's32[1]{0}', space=sflag, size = 0x4, scoped, tag = 'scoped memory for tpu_custom_call.1']
    #allocation7 [shape = 'u8[512]{0}', space=vmem, size = 0x400, scoped, tag = 'input window, operand 2, single buffered']
    #allocation8 [shape = 'u8[65536]{0}', space=vmem, size = 0x10000, scoped, tag = 'input window, operand 3, single buffered']
    #allocation9 [shape = 's32[1]{0}', space=sflag, size = 0x4, scoped, tag = 'scoped memory for tpu_custom_call.1']
    #allocation10 [shape = 'u8[512]{0}', space=vmem, size = 0x400, scoped, tag = 'input window, operand 4, single buffered']
    #allocation11 [shape = 'u8[65536]{0}', space=vmem, size = 0x10000, scoped, tag = 'input window, operand 5, single buffered']
    #allocation12 [shape = 's32[1]{0}', space=sflag, size = 0x4, scoped, tag = 'scoped memory for tpu_custom_call.1']
    #allocation13 [shape = 'u8[512]{0}', space=vmem, size = 0x400, scoped, tag = 'input window, operand 6, single buffered']
    #allocation14 [shape = 'u8[8192]{0}', space=vmem, size = 0x2000, scoped, tag = 'output window, operand 0, single buffered']
    %12 = vsyncpa [#allocation3], 0
    %13 = vsyncpa [#allocation6], 0
    %14 = vsyncpa [#allocation9], 0
    %15 = vsyncpa [#allocation12], 0
    %16 = vsyncpa [#allocation4], 0
    // Predicated region
    $region2: #{tpu_custom_call.1} parent=1 // pred_check
      _
    $region3: #{tpu_custom_call.1} parent=1 // pred_check_branch
      %18 = sbr.rel (0) target = $region5
    $region4: #{tpu_custom_call.1} parent=1 // pred_region
      %s20 = ssub.s32 256, 256
      %21 = vsyncadd [#allocation3], %s20
      %s22 = sshll.u32 [#allocation2], 4
      %s23 = int_to_ptr.vmem [resolvable:$true] %s22
      %28 = dma.hbm_to_vmem [thread:$0]  %s0, 256, %s23, [#allocation3], 128, 128, 8
    $region5: #{tpu_custom_call.1} parent=1 // pred_fallthru
      _
    // Predicated region
    $region6: #{tpu_custom_call.1} parent=1 // pred_check
      _
    $region7: #{tpu_custom_call.1} parent=1 // pred_check_branch
      %30 = sbr.rel (0) target = $region9
    $region8: #{tpu_custom_call.1} parent=1 // pred_region
      %s32 = ssub.s32 256, 256
      %33 = vsyncadd [#allocation6], %s32
      %s34 = sshll.u32 [#allocation5], 4
      %s35 = int_to_ptr.vmem [resolvable:$true] %s34
      %40 = dma.hbm_to_vmem [thread:$0]  %s1, 256, %s35, [#allocation6], 128, 128, 8
    $region9: #{tpu_custom_call.1} parent=1 // pred_fallthru
      _
    // Predicated region
    $region10: #{tpu_custom_call.1} parent=1 // pred_check
      _
    $region11: #{tpu_custom_call.1} parent=1 // pred_check_branch
      %42 = sbr.rel (0) target = $region13
    $region12: #{tpu_custom_call.1} parent=1 // pred_region
      %s44 = ssub.s32 16, 16
      %45 = vsyncadd [#allocation6], %s44
      %s47 = sshll.u32 [#allocation7], 4
      %s48 = int_to_ptr.vmem [resolvable:$true] %s47
      %50 = dma.hbm_to_vmem [thread:$0]  %s2, 16, %s48, [#allocation6]
    $region13: #{tpu_custom_call.1} parent=1 // pred_fallthru
      _
    // Predicated region
    $region14: #{tpu_custom_call.1} parent=1 // pred_check
      _
    $region15: #{tpu_custom_call.1} parent=1 // pred_check_branch
      %52 = sbr.rel (0) target = $region17
    $region16: #{tpu_custom_call.1} parent=1 // pred_region
      %s54 = ssub.s32 2048, 2048
      %55 = vsyncadd [#allocation9], %s54
      %s56 = sshll.u32 [#allocation8], 4
      %s57 = int_to_ptr.vmem [resolvable:$true] %s56
      %62 = dma.hbm_to_vmem [thread:$0]  %s3, 2048, %s57, [#allocation9], 128, 128, 8
    $region17: #{tpu_custom_call.1} parent=1 // pred_fallthru
      _
    // Predicated region
    $region18: #{tpu_custom_call.1} parent=1 // pred_check
      _
    $region19: #{tpu_custom_call.1} parent=1 // pred_check_branch
      %64 = sbr.rel (0) target = $region21
    $region20: #{tpu_custom_call.1} parent=1 // pred_region
      %s66 = ssub.s32 16, 16
      %67 = vsyncadd [#allocation9], %s66
      %s69 = sshll.u32 [#allocation10], 4
      %s70 = int_to_ptr.vmem [resolvable:$true] %s69
      %72 = dma.hbm_to_vmem [thread:$0]  %s4, 16, %s70, [#allocation9]
    $region21: #{tpu_custom_call.1} parent=1 // pred_fallthru
      _
    // Predicated region
    $region22: #{tpu_custom_call.1} parent=1 // pred_check
      _
    $region23: #{tpu_custom_call.1} parent=1 // pred_check_branch
      %74 = sbr.rel (0) target = $region25
    $region24: #{tpu_custom_call.1} parent=1 // pred_region
      %s76 = ssub.s32 2048, 2048
      %77 = vsyncadd [#allocation12], %s76
      %s78 = sshll.u32 [#allocation11], 4
      %s79 = int_to_ptr.vmem [resolvable:$true] %s78
      %84 = dma.hbm_to_vmem [thread:$0]  %s5, 2048, %s79, [#allocation12], 128, 128, 8
    $region25: #{tpu_custom_call.1} parent=1 // pred_fallthru
      _
    // Predicated region
    $region26: #{tpu_custom_call.1} parent=1 // pred_check
      _
    $region27: #{tpu_custom_call.1} parent=1 // pred_check_branch
      %86 = sbr.rel (0) target = $region29
    $region28: #{tpu_custom_call.1} parent=1 // pred_region
      %s88 = ssub.s32 16, 16
      %89 = vsyncadd [#allocation12], %s88
      %s91 = sshll.u32 [#allocation13], 4
      %s92 = int_to_ptr.vmem [resolvable:$true] %s91
      %94 = dma.hbm_to_vmem [thread:$0]  %s6, 16, %s92, [#allocation12]
    $region29: #{tpu_custom_call.1} parent=1 // pred_fallthru
      _
    // Predicated region
    $region30: #{tpu_custom_call.1} parent=1 // pred_check
      _
    $region31: #{tpu_custom_call.1} parent=1 // pred_check_branch
      %96 = sbr.rel (0) target = $region33
    $region32: #{tpu_custom_call.1} parent=1 // pred_region
      %97 = dma.done [#allocation3], 256
    $region33: #{tpu_custom_call.1} parent=1 // pred_fallthru
      _
    // Predicated region
    $region34: #{tpu_custom_call.1} parent=1 // pred_check
      _
    $region35: #{tpu_custom_call.1} parent=1 // pred_check_branch
      %99 = sbr.rel (0) target = $region37
    $region36: #{tpu_custom_call.1} parent=1 // pred_region
      %100 = dma.done [#allocation6], 256
    $region37: #{tpu_custom_call.1} parent=1 // pred_fallthru
      _
    // Predicated region
    $region38: #{tpu_custom_call.1} parent=1 // pred_check
      _
    $region39: #{tpu_custom_call.1} parent=1 // pred_check_branch
      %102 = sbr.rel (0) target = $region41
    $region40: #{tpu_custom_call.1} parent=1 // pred_region
      %103 = dma.done [#allocation6], 16
    $region41: #{tpu_custom_call.1} parent=1 // pred_fallthru
      _
    // Predicated region
    $region42: #{tpu_custom_call.1} parent=1 // pred_check
      _
    $region43: #{tpu_custom_call.1} parent=1 // pred_check_branch
      %105 = sbr.rel (0) target = $region45
    $region44: #{tpu_custom_call.1} parent=1 // pred_region
      %106 = dma.done [#allocation9], 2048
    $region45: #{tpu_custom_call.1} parent=1 // pred_fallthru
      _
    // Predicated region
    $region46: #{tpu_custom_call.1} parent=1 // pred_check
      _
    $region47: #{tpu_custom_call.1} parent=1 // pred_check_branch
      %108 = sbr.rel (0) target = $region49
    $region48: #{tpu_custom_call.1} parent=1 // pred_region
      %109 = dma.done [#allocation9], 16
    $region49: #{tpu_custom_call.1} parent=1 // pred_fallthru
      _
    // Predicated region
    $region50: #{tpu_custom_call.1} parent=1 // pred_check
      _
    $region51: #{tpu_custom_call.1} parent=1 // pred_check_branch
      %111 = sbr.rel (0) target = $region53
    $region52: #{tpu_custom_call.1} parent=1 // pred_region
      %112 = dma.done [#allocation12], 2048
    $region53: #{tpu_custom_call.1} parent=1 // pred_fallthru
      _
    // Predicated region
    $region54: #{tpu_custom_call.1} parent=1 // pred_check
      _
    $region55: #{tpu_custom_call.1} parent=1 // pred_check_branch
      %114 = sbr.rel (0) target = $region57
    $region56: #{tpu_custom_call.1} parent=1 // pred_region
      %115 = dma.done [#allocation12], 16
    $region57: #{tpu_custom_call.1} parent=1 // pred_fallthru
      _
    %v116 = vld [vmem:[#allocation2] sm:$0xff]
    %v117 = vld [vmem:[#allocation2 + $0x8] sm:$0xff]
    %v118 = vld [vmem:[#allocation5] sm:$0xff]
    %v119 = vld [vmem:[#allocation5 + $0x8] sm:$0xff]
    %v120 = vld [vmem:[#allocation7] sm:$0x1]
    %v122 = vlaneseq
    %v123 = vshrl.u32 %v122, 7
    %v124 = vsub.s32 0, %v123
    %v125 = vrot.slane %v120, %v124
    %vm127 = vcmask 130048
    %v129 = vsel %vm127, %v116, 0
    %v132 = vsel %vm127, %v117, 0
    %134 = vmatprep.subr.mxu0 0.0
    %135 = vmatpush1.msra.mxu0 %v118
    %136 = vmatprep.subr.mxu0 0.0
    %137 = vmatpush1.msra.mxu0 %v119
    %138 = vmatprep.subr.mxu0 0.0
    %139 = vmatpush1.msra.mxu0 0.0
    %140 = vmatprep.subr.mxu0 0.0
    %141 = vmatpush1.msra.mxu0 0.0
    %142 = vmatprep.subr.mxu0 0.0
    %143 = vmatpush1.msra.mxu0 0.0
    %144 = vmatprep.subr.mxu0 0.0
    %145 = vmatpush1.msra.mxu0 0.0
    %146 = vmatprep.subr.mxu0 0.0
    %147 = vmatpush1.msra.mxu0 0.0
    %148 = vmatprep.subr.mxu0 0.0
    %149 = vmatpush1.msra.mxu0 0.0
    %150 = vmatprep.subr.mxu0 0.0
    %151 = vmatpush1.msra.mxu0 0.0
    %152 = vmatprep.subr.mxu0 0.0
    %153 = vmatpush1.msra.mxu0 0.0
    %154 = vmatprep.subr.mxu0 0.0
    %155 = vmatpush1.msra.mxu0 0.0
    %156 = vmatprep.subr.mxu0 0.0
    %157 = vmatpush1.msra.mxu0 0.0
    %158 = vmatprep.subr.mxu0 0.0
    %159 = vmatpush1.msra.mxu0 0.0
    %160 = vmatprep.subr.mxu0 0.0
    %161 = vmatpush1.msra.mxu0 0.0
    %162 = vmatprep.subr.mxu0 0.0
    %163 = vmatpush1.msra.mxu0 0.0
    %164 = vmatprep.subr.mxu0 0.0
    %165 = vmatpush1.msra.mxu0 0.0
    %166 = vmatprep.subr.mxu0 0.0
    %167 = vmatpush1.msra.mxu0 0.0
    %168 = vmatprep.subr.mxu0 0.0
    %169 = vmatpush1.msra.mxu0 0.0
    %170 = vmatprep.subr.mxu0 0.0
    %171 = vmatpush1.msra.mxu0 0.0
    %172 = vmatprep.subr.mxu0 0.0
    %173 = vmatpush1.msra.mxu0 0.0
    %174 = vmatprep.subr.mxu0 0.0
    %175 = vmatpush1.msra.mxu0 0.0
    %176 = vmatprep.subr.mxu0 0.0
    %177 = vmatpush1.msra.mxu0 0.0
    %178 = vmatprep.subr.mxu0 0.0
    %179 = vmatpush1.msra.mxu0 0.0
    %180 = vmatprep.subr.mxu0 0.0
    %181 = vmatpush1.msra.mxu0 0.0
    %182 = vmatprep.subr.mxu0 0.0
    %183 = vmatpush1.msra.mxu0 0.0
    %184 = vmatprep.subr.mxu0 0.0
    %185 = vmatpush1.msra.mxu0 0.0
    %186 = vmatprep.subr.mxu0 0.0
    %187 = vmatpush1.msra.mxu0 0.0
    %188 = vmatprep.subr.mxu0 0.0
    %189 = vmatpush1.msra.mxu0 0.0
    %190 = vmatprep.subr.mxu0 0.0
    %191 = vmatpush1.msra.mxu0 0.0
    %192 = vmatprep.subr.mxu0 0.0
    %193 = vmatpush1.msra.mxu0 0.0
    %194 = vmatprep.subr.mxu0 0.0
    %195 = vmatpush1.msra.mxu0 0.0
    %196 = vmatprep.subr.mxu0 0.0
    %197 = vmatpush1.msra.mxu0 0.0
    %198 = vmatprep.mubr.f32.mxu0 0.0
    %199 = vmatmul.mubr.f32.gmra.mrb[0].mxu0 %v129
    %v200 = vpop.f32.mrb[0].mxu0
    %v201 = vadd.f32 %v125, %v200
    %v202 = vpop.f32.mrb[0].mxu0
    %203 = vmatprep.mubr.f32.mxu0 0.0
    %204 = vmatmul.mubr.f32.gmra.mrb[0].mxu0 %v132
    %v205 = vpop.f32.mrb[0].mxu0
    %v206 = vadd.f32 %v125, %v205
    %v207 = vpop.f32.mrb[0].mxu0
    %208 = vdwg.mxu0
    %v209 = vmax.f32 %v201, 0.0
    %v210 = vmax.f32 %v206, 0.0
    %v211 = vld [vmem:[#allocation8] sm:$0xff]
    %v212 = vld [vmem:[#allocation8 + $0x8] sm:$0xff]
    %v213 = vld [vmem:[#allocation8 + $0x10] sm:$0xff]
    %v214 = vld [vmem:[#allocation8 + $0x18] sm:$0xff]
    %v215 = vld [vmem:[#allocation8 + $0x20] sm:$0xff]
    %v216 = vld [vmem:[#allocation8 + $0x28] sm:$0xff]
    %v217 = vld [vmem:[#allocation8 + $0x30] sm:$0xff]
    %v218 = vld [vmem:[#allocation8 + $0x38] sm:$0xff]
    %v219 = vld [vmem:[#allocation8 + $0x40] sm:$0xff]
    %v220 = vld [vmem:[#allocation8 + $0x48] sm:$0xff]
    %v221 = vld [vmem:[#allocation8 + $0x50] sm:$0xff]
    %v222 = vld [vmem:[#allocation8 + $0x58] sm:$0xff]
    %v223 = vld [vmem:[#allocation8 + $0x60] sm:$0xff]
    %v224 = vld [vmem:[#allocation8 + $0x68] sm:$0xff]
    %v225 = vld [vmem:[#allocation8 + $0x70] sm:$0xff]
    %v226 = vld [vmem:[#allocation8 + $0x78] sm:$0xff]
    %v227 = vld [vmem:[#allocation10] sm:$0x1]
    %v229 = vlaneseq
    %v230 = vshrl.u32 %v229, 7
    %v231 = vsub.s32 0, %v230
    %v232 = vrot.slane %v227, %v231
    %234 = vmatprep.subr.mxu0 0.0
    %235 = vmatpush1.msra.mxu0 %v211
    %236 = vmatprep.subr.mxu0 0.0
    %237 = vmatpush1.msra.mxu0 %v212
    %238 = vmatprep.subr.mxu0 0.0
    %239 = vmatpush1.msra.mxu0 %v213
    %240 = vmatprep.subr.mxu0 0.0
    %241 = vmatpush1.msra.mxu0 %v214
    %242 = vmatprep.subr.mxu0 0.0
    %243 = vmatpush1.msra.mxu0 %v215
    %244 = vmatprep.subr.mxu0 0.0
    %245 = vmatpush1.msra.mxu0 %v216
    %246 = vmatprep.subr.mxu0 0.0
    %247 = vmatpush1.msra.mxu0 %v217
    %248 = vmatprep.subr.mxu0 0.0
    %249 = vmatpush1.msra.mxu0 %v218
    %250 = vmatprep.subr.mxu0 0.0
    %251 = vmatpush1.msra.mxu0 %v219
    %252 = vmatprep.subr.mxu0 0.0
    %253 = vmatpush1.msra.mxu0 %v220
    %254 = vmatprep.subr.mxu0 0.0
    %255 = vmatpush1.msra.mxu0 %v221
    %256 = vmatprep.subr.mxu0 0.0
    %257 = vmatpush1.msra.mxu0 %v222
    %258 = vmatprep.subr.mxu0 0.0
    %259 = vmatpush1.msra.mxu0 %v223
    %260 = vmatprep.subr.mxu0 0.0
    %261 = vmatpush1.msra.mxu0 %v224
    %262 = vmatprep.subr.mxu0 0.0
    %263 = vmatpush1.msra.mxu0 %v225
    %264 = vmatprep.subr.mxu0 0.0
    %265 = vmatpush1.msra.mxu0 %v226
    %266 = vmatprep.subr.mxu0 0.0
    %267 = vmatpush1.msra.mxu0 0.0
    %268 = vmatprep.subr.mxu0 0.0
    %269 = vmatpush1.msra.mxu0 0.0
    %270 = vmatprep.subr.mxu0 0.0
    %271 = vmatpush1.msra.mxu0 0.0
    %272 = vmatprep.subr.mxu0 0.0
    %273 = vmatpush1.msra.mxu0 0.0
    %274 = vmatprep.subr.mxu0 0.0
    %275 = vmatpush1.msra.mxu0 0.0
    %276 = vmatprep.subr.mxu0 0.0
    %277 = vmatpush1.msra.mxu0 0.0
    %278 = vmatprep.subr.mxu0 0.0
    %279 = vmatpush1.msra.mxu0 0.0
    %280 = vmatprep.subr.mxu0 0.0
    %281 = vmatpush1.msra.mxu0 0.0
    %282 = vmatprep.subr.mxu0 0.0
    %283 = vmatpush1.msra.mxu0 0.0
    %284 = vmatprep.subr.mxu0 0.0
    %285 = vmatpush1.msra.mxu0 0.0
    %286 = vmatprep.subr.mxu0 0.0
    %287 = vmatpush1.msra.mxu0 0.0
    %288 = vmatprep.subr.mxu0 0.0
    %289 = vmatpush1.msra.mxu0 0.0
    %290 = vmatprep.subr.mxu0 0.0
    %291 = vmatpush1.msra.mxu0 0.0
    %292 = vmatprep.subr.mxu0 0.0
    %293 = vmatpush1.msra.mxu0 0.0
    %294 = vmatprep.subr.mxu0 0.0
    %295 = vmatpush1.msra.mxu0 0.0
    %296 = vmatprep.subr.mxu0 0.0
    %297 = vmatpush1.msra.mxu0 0.0
    %298 = vmatprep.mubr.f32.mxu0 0.0
    %299 = vmatmul.mubr.f32.gmra.mrb[0].mxu0 %v209
    %v300 = vpop.f32.mrb[0].mxu0
    %v301 = vadd.f32 %v232, %v300
    %v302 = vpop.f32.mrb[0].mxu0
    %303 = vmatprep.mubr.f32.mxu0 0.0
    %304 = vmatmul.mubr.f32.gmra.mrb[0].mxu0 %v210
    %v305 = vpop.f32.mrb[0].mxu0
    %v306 = vadd.f32 %v232, %v305
    %v307 = vpop.f32.mrb[0].mxu0
    %308 = vdwg.mxu0
    %v309 = vmax.f32 %v301, 0.0
    %v310 = vmax.f32 %v306, 0.0
    %v311 = vld [vmem:[#allocation11] sm:$0xff]
    %v312 = vld [vmem:[#allocation11 + $0x8] sm:$0xff]
    %v313 = vld [vmem:[#allocation11 + $0x10] sm:$0xff]
    %v314 = vld [vmem:[#allocation11 + $0x18] sm:$0xff]
    %v315 = vld [vmem:[#allocation11 + $0x20] sm:$0xff]
    %v316 = vld [vmem:[#allocation11 + $0x28] sm:$0xff]
    %v317 = vld [vmem:[#allocation11 + $0x30] sm:$0xff]
    %v318 = vld [vmem:[#allocation11 + $0x38] sm:$0xff]
    %v319 = vld [vmem:[#allocation11 + $0x40] sm:$0xff]
    %v320 = vld [vmem:[#allocation11 + $0x48] sm:$0xff]
    %v321 = vld [vmem:[#allocation11 + $0x50] sm:$0xff]
    %v322 = vld [vmem:[#allocation11 + $0x58] sm:$0xff]
    %v323 = vld [vmem:[#allocation11 + $0x60] sm:$0xff]
    %v324 = vld [vmem:[#allocation11 + $0x68] sm:$0xff]
    %v325 = vld [vmem:[#allocation11 + $0x70] sm:$0xff]
    %v326 = vld [vmem:[#allocation11 + $0x78] sm:$0xff]
    %v327 = vld [vmem:[#allocation13] sm:$0x1]
    %v329 = vlaneseq
    %v330 = vshrl.u32 %v329, 7
    %v331 = vsub.s32 0, %v330
    %v332 = vrot.slane %v327, %v331
    %334 = vmatprep.subr.mxu0 0.0
    %335 = vmatpush1.msra.mxu0 %v311
    %336 = vmatprep.subr.mxu0 0.0
    %337 = vmatpush1.msra.mxu0 %v312
    %338 = vmatprep.subr.mxu0 0.0
    %339 = vmatpush1.msra.mxu0 %v313
    %340 = vmatprep.subr.mxu0 0.0
    %341 = vmatpush1.msra.mxu0 %v314
    %342 = vmatprep.subr.mxu0 0.0
    %343 = vmatpush1.msra.mxu0 %v315
    %344 = vmatprep.subr.mxu0 0.0
    %345 = vmatpush1.msra.mxu0 %v316
    %346 = vmatprep.subr.mxu0 0.0
    %347 = vmatpush1.msra.mxu0 %v317
    %348 = vmatprep.subr.mxu0 0.0
    %349 = vmatpush1.msra.mxu0 %v318
    %350 = vmatprep.subr.mxu0 0.0
    %351 = vmatpush1.msra.mxu0 %v319
    %352 = vmatprep.subr.mxu0 0.0
    %353 = vmatpush1.msra.mxu0 %v320
    %354 = vmatprep.subr.mxu0 0.0
    %355 = vmatpush1.msra.mxu0 %v321
    %356 = vmatprep.subr.mxu0 0.0
    %357 = vmatpush1.msra.mxu0 %v322
    %358 = vmatprep.subr.mxu0 0.0
    %359 = vmatpush1.msra.mxu0 %v323
    %360 = vmatprep.subr.mxu0 0.0
    %361 = vmatpush1.msra.mxu0 %v324
    %362 = vmatprep.subr.mxu0 0.0
    %363 = vmatpush1.msra.mxu0 %v325
    %364 = vmatprep.subr.mxu0 0.0
    %365 = vmatpush1.msra.mxu0 %v326
    %366 = vmatprep.subr.mxu0 0.0
    %367 = vmatpush1.msra.mxu0 0.0
    %368 = vmatprep.subr.mxu0 0.0
    %369 = vmatpush1.msra.mxu0 0.0
    %370 = vmatprep.subr.mxu0 0.0
    %371 = vmatpush1.msra.mxu0 0.0
    %372 = vmatprep.subr.mxu0 0.0
    %373 = vmatpush1.msra.mxu0 0.0
    %374 = vmatprep.subr.mxu0 0.0
    %375 = vmatpush1.msra.mxu0 0.0
    %376 = vmatprep.subr.mxu0 0.0
    %377 = vmatpush1.msra.mxu0 0.0
    %378 = vmatprep.subr.mxu0 0.0
    %379 = vmatpush1.msra.mxu0 0.0
    %380 = vmatprep.subr.mxu0 0.0
    %381 = vmatpush1.msra.mxu0 0.0
    %382 = vmatprep.subr.mxu0 0.0
    %383 = vmatpush1.msra.mxu0 0.0
    %384 = vmatprep.subr.mxu0 0.0
    %385 = vmatpush1.msra.mxu0 0.0
    %386 = vmatprep.subr.mxu0 0.0
    %387 = vmatpush1.msra.mxu0 0.0
    %388 = vmatprep.subr.mxu0 0.0
    %389 = vmatpush1.msra.mxu0 0.0
    %390 = vmatprep.subr.mxu0 0.0
    %391 = vmatpush1.msra.mxu0 0.0
    %392 = vmatprep.subr.mxu0 0.0
    %393 = vmatpush1.msra.mxu0 0.0
    %394 = vmatprep.subr.mxu0 0.0
    %395 = vmatpush1.msra.mxu0 0.0
    %396 = vmatprep.subr.mxu0 0.0
    %397 = vmatpush1.msra.mxu0 0.0
    %398 = vmatprep.mubr.f32.mxu0 0.0
    %399 = vmatmul.mubr.f32.gmra.mrb[0].mxu0 %v309
    %v400 = vpop.f32.mrb[0].mxu0
    %v401 = vadd.f32 %v332, %v400
    %v402 = vpop.f32.mrb[0].mxu0
    %403 = vmatprep.mubr.f32.mxu0 0.0
    %404 = vmatmul.mubr.f32.gmra.mrb[0].mxu0 %v310
    %v405 = vpop.f32.mrb[0].mxu0
    %v406 = vadd.f32 %v332, %v405
    %v407 = vpop.f32.mrb[0].mxu0
    %408 = vdwg.mxu0
    %v409 = vlaneseq
    %v410 = vand.u32 %v409, 127
    %vm411 = vcmp.lt.s32.totalorder %v410, 8
    %v412 = vsel %vm411, %v401, -1e+30
    %v413 = vsel %vm411, %v406, -1e+30
    %414 = vmax.xlane.f32.xlu0 %v412
    %v415 = vpop.xlane.xlu0 %414
    %416 = vmax.xlane.f32.xlu0 %v413
    %v417 = vpop.xlane.xlu0 %416
    %v418 = vsub.f32 %v412, %v415
    %v419 = vsub.f32 %v413, %v417
    %v420 = vmul.f32 %v418, 1.442695
    %v421 = vpow.pop %v420
    %v422 = vmul.f32 %v419, 1.442695
    %v423 = vpow.pop %v422
    %424 = vadd.xlane.f32.xlu0 %v421
    %v425 = vpop.xlane.xlu0 %424
    %426 = vadd.xlane.f32.xlu0 %v423
    %v427 = vpop.xlane.xlu0 %426
    %v428 = vrcp.pop %v425
    %v429 = vmul.f32 %v421, %v428
    %v430 = vrcp.pop %v427
    %v431 = vmul.f32 %v423, %v430
    %432 = vst [vmem:[#allocation14] sm:$0xff] %v429
    %433 = vst [vmem:[#allocation14 + $0x8] sm:$0xff] %v431
    // Predicated region
    $region58: #{tpu_custom_call.1} parent=1 // pred_check
      _
    $region59: #{tpu_custom_call.1} parent=1 // pred_check_branch
      %435 = sbr.rel (0) target = $region61
    $region60: #{tpu_custom_call.1} parent=1 // pred_region
      %s437 = ssub.s32 256, 256
      %438 = vsyncadd [#allocation4], %s437
      %s439 = sshll.u32 [#allocation14], 4
      %s440 = int_to_ptr.vmem [resolvable:$true] %s439
      %445 = dma.vmem_to_hbm [thread:$0]  %s440, 256, %s7, [#allocation4], 128, 128, 8
    $region61: #{tpu_custom_call.1} parent=1 // pred_fallthru
      _
    // Predicated region
    $region62: #{tpu_custom_call.1} parent=1 // pred_check
      _
    $region63: #{tpu_custom_call.1} parent=1 // pred_check_branch
      %447 = sbr.rel (0) target = $region65
    $region64: #{tpu_custom_call.1} parent=1 // pred_region
      %448 = dma.done [#allocation4], 256
    $region65: #{tpu_custom_call.1} parent=1 // pred_fallthru
      _
    %449 = vsyncpa [#allocation3], 1
    %450 = vsyncpa [#allocation6], 1
    %451 = vsyncpa [#allocation9], 1
    %452 = vsyncpa [#allocation12], 1
    %453 = vsyncpa [#allocation4], 1

</llo_original>
